<compile_context>
chip_gen: v7x
topology: tpu7x:2x2x1
jax: 0.10.0
libtpu: 0.0.40
codegen_flags: <defaults>
</compile_context>

<pallas_src>
import functools

import jax
import jax.numpy as jnp
from jax import lax
from jax.experimental import pallas as pl
from jax.experimental.pallas import tpu as pltpu


def _channel_norm_kernel(x_ref, g_ref, b_ref, o_ref, *, eps, num_channels):
    # x_ref/o_ref: (TB, C, T)   g_ref/b_ref: (C, 1)
    # Stats are computed over the channel (sublane) axis, independently per
    # (batch, spatial-column), so batch/lane tiling never mixes statistics.
    x = x_ref[...].astype(jnp.float32)
    mu = jnp.sum(x, axis=1, keepdims=True) * (1.0 / num_channels)      # (TB, 1, T)
    diff = x - mu
    # Unbiased variance (torch.var default). Guard C == 1 (torch would give NaN).
    denom = max(num_channels - 1, 1)
    var = jnp.sum(diff * diff, axis=1, keepdims=True) * (1.0 / denom)
    inv_std = lax.rsqrt(var + eps)                                     # EUP slot
    gamma = g_ref[...][None]                                           # (1, C, 1)
    beta = b_ref[...][None]
    o_ref[...] = (gamma * (diff * inv_std) + beta).astype(o_ref.dtype)


def _vmem_capacity_bytes():
    """Physical VMEM of the current generation (v5e/v6e: 128 MiB, v7x: 64 MiB)."""
    try:
        cap = getattr(pltpu.get_tpu_info(), "vmem_capacity_bytes", None)
        if cap:
            return int(cap)
    except Exception:
        pass
    return 64 * 1024 * 1024   # conservative fallback = v7x physical VMEM


def _pick_tiles(batch, num_channels, hw, in_bytes, out_bytes, budget_bytes,
                *, max_lane_tile=32768):
    """Pick (batch_tile, lane_tile) so one grid step moves as many bytes as the
    VMEM budget allows.

    Per-element budget model for a (TB, c_pad, tile) block: double-buffered
    input + output in their storage dtype, plus ~3 f32 in-kernel temporaries
    (x cast, diff, pre-cast result).
    """
    c_pad = ((num_channels + 7) // 8) * 8
    bytes_per_elem = 2 * in_bytes + 2 * out_bytes + 3 * 4
    max_elems = max(budget_bytes // bytes_per_elem, 128 * c_pad)

    # --- lane (spatial) tile ---
    if hw % 128 != 0:
        # Full row per block: block dim == full array dim satisfies the lane
        # constraint, and the ragged tail never needs a wrapper-side pad/slice.
        tile_hw = hw
    else:
        budget_tile = (max_elems // c_pad) // 128 * 128
        tile_hw = max(128, min(max_lane_tile, budget_tile, hw))
        # Prefer a tile that divides HW exactly (no partial blocks), but only
        # if that does not shrink the tile by more than 2x.
        if hw % tile_hw != 0:
            t = tile_hw
            while t > 128 and hw % t != 0:
                t -= 128
            if hw % t == 0 and t >= tile_hw // 2:
                tile_hw = t

    # --- batch tile: grow per-step DMA volume without touching the lane tile ---
    per_batch_elems = c_pad * tile_hw
    tb = max(1, min(batch, max_elems // per_batch_elems))
    while tb > 1 and batch % tb != 0:        # keep full blocks on the leading axis
        tb -= 1

    # Megacore (v7x, 2 TCs): if everything fits in one step, split the batch
    # axis -- but only when the block is big enough (>= ~4 MiB) that the extra
    # ~0.35us grid-step overhead is negligible on single-TC chips too.
    n_lane_steps = pl.cdiv(hw, tile_hw)
    block_bytes = tb * c_pad * tile_hw * in_bytes
    if (batch // tb) * n_lane_steps < 2 and tb > 1 and block_bytes >= (4 << 20):
        half = tb // 2
        while half > 1 and batch % half != 0:
            half -= 1
        tb = max(1, half)

    return tb, tile_hw


def channel_norm_2d(x, gamma, beta, *, eps=1e-3):
    """x: (B, C, H, W) NCHW; gamma/beta broadcastable to (1, C, 1, 1)."""
    B, C, H, W = x.shape
    HW = H * W

    vmem_cap = _vmem_capacity_bytes()
    budget = vmem_cap // 3                                    # ~21 MiB v7x, ~42 MiB v5e/v6e
    vmem_limit = max(32 * 1024 * 1024, (vmem_cap * 5) // 8)   # 40 MiB v7x, 80 MiB v5e/v6e

    in_bytes = jnp.dtype(x.dtype).itemsize
    tb, tile_hw = _pick_tiles(B, C, HW, in_bytes, in_bytes, budget)

    x_flat = x.reshape(B, C, HW)
    g = jnp.asarray(gamma, jnp.float32).reshape(C, 1)
    b = jnp.asarray(beta, jnp.float32).reshape(C, 1)

    kernel = functools.partial(_channel_norm_kernel, eps=eps, num_channels=C)

    grid = (B // tb, pl.cdiv(HW, tile_hw))
    out_flat = pl.pallas_call(
        kernel,
        out_shape=jax.ShapeDtypeStruct((B, C, HW), x.dtype),
        grid_spec=pltpu.PrefetchScalarGridSpec(
            num_scalar_prefetch=0,
            grid=grid,
            in_specs=[
                pl.BlockSpec((tb, C, tile_hw), lambda i, j: (i, 0, j)),
                pl.BlockSpec((C, 1), lambda i, j: (0, 0)),
                pl.BlockSpec((C, 1), lambda i, j: (0, 0)),
            ],
            out_specs=pl.BlockSpec((tb, C, tile_hw), lambda i, j: (i, 0, j)),
        ),
        compiler_params=pltpu.CompilerParams(
            dimension_semantics=("parallel", "parallel"),
            vmem_limit_bytes=int(vmem_limit),
        ),
    )(x_flat, g, b)

    return out_flat.reshape(B, C, H, W)


def _reference(x, gamma, beta, eps):
    # Pure-JAX reference mirroring the PyTorch forward.
    mu = jnp.mean(x, axis=1, keepdims=True)
    var = jnp.var(x, axis=1, keepdims=True, ddof=1)   # unbiased, like torch.var
    return gamma * ((x - mu) * lax.rsqrt(var + eps)) + beta


if __name__ == "__main__":
    key = jax.random.PRNGKey(0)
    B, C, H, W = 2, 4, 16, 16
    eps = 1e-3

    x = jax.random.normal(key, (B, C, H, W), dtype=jnp.float32)
    # Deterministic parameter init matching nn.Parameter(torch.ones/zeros(...))
    gamma = jnp.ones((1, C, 1, 1), dtype=jnp.float32)
    beta = jnp.zeros((1, C, 1, 1), dtype=jnp.float32)

    out = channel_norm_2d(x, gamma, beta, eps=eps)
    out = jax.block_until_ready(out)

    ref = _reference(x, gamma, beta, eps)
    assert out.shape == (B, C, H, W)
    assert jnp.allclose(out, ref, atol=1e-5, rtol=1e-5), "mismatch vs reference"

    print("KERNEL_OK")
</pallas_src>

<mosaic_0001>
module attributes {stable_mosaic.version = 11 : i64} {
  func.func @_channel_norm_kernel(%arg0: i32, %arg1: i32, %arg2: memref<2x4x256xf32, #tpu.memory_space<vmem>>, %arg3: memref<4x1xf32, #tpu.memory_space<vmem>>, %arg4: memref<4x1xf32, #tpu.memory_space<vmem>>, %arg5: memref<2x4x256xf32, #tpu.memory_space<vmem>>) attributes {dimension_semantics = [#tpu.dimension_semantics<parallel>, #tpu.dimension_semantics<parallel>], iteration_bounds = array<i64: 1, 1>, scalar_prefetch = 0 : i64, scratch_operands = 0 : i64, tpu.core_type = #tpu.core_type<tc>, window_params = [{transform_indices = @transform_0, window_bounds = array<i64: 2, 4, 256>}, {pipeline_mode = #tpu.pipeline_mode<synchronous>, transform_indices = @transform_1, window_bounds = array<i64: 4, 1>}, {pipeline_mode = #tpu.pipeline_mode<synchronous>, transform_indices = @transform_2, window_bounds = array<i64: 4, 1>}, {transform_indices = @transform_3, window_bounds = array<i64: 2, 4, 256>}]} {
    %c0 = arith.constant 0 : index
    %c0_0 = arith.constant 0 : index
    %c0_1 = arith.constant 0 : index
    %0 = vector.load %arg2[%c0, %c0_0, %c0_1] : memref<2x4x256xf32, #tpu.memory_space<vmem>>, vector<2x4x256xf32>
    %cst = arith.constant dense<0.000000e+00> : vector<2x256xf32>
    %1 = vector.multi_reduction <add>, %0, %cst [1] : vector<2x4x256xf32> to vector<2x256xf32>
    %2 = vector.shape_cast %1 : vector<2x256xf32> to vector<2x1x256xf32>
    %cst_2 = arith.constant 2.500000e-01 : f32
    %3 = vector.broadcast %cst_2 : f32 to vector<2x1x256xf32>
    %4 = arith.mulf %2, %3 : vector<2x1x256xf32>
    %5 = vector.broadcast %4 : vector<2x1x256xf32> to vector<2x4x256xf32>
    %6 = arith.subf %0, %5 : vector<2x4x256xf32>
    %7 = arith.mulf %6, %6 : vector<2x4x256xf32>
    %cst_3 = arith.constant dense<0.000000e+00> : vector<2x256xf32>
    %8 = vector.multi_reduction <add>, %7, %cst_3 [1] : vector<2x4x256xf32> to vector<2x256xf32>
    %9 = vector.shape_cast %8 : vector<2x256xf32> to vector<2x1x256xf32>
    %cst_4 = arith.constant 0.333333343 : f32
    %10 = vector.broadcast %cst_4 : f32 to vector<2x1x256xf32>
    %11 = arith.mulf %9, %10 : vector<2x1x256xf32>
    %cst_5 = arith.constant 1.000000e-03 : f32
    %12 = vector.broadcast %cst_5 : f32 to vector<2x1x256xf32>
    %13 = arith.addf %11, %12 : vector<2x1x256xf32>
    %14 = math.rsqrt %13 : vector<2x1x256xf32>
    %c0_6 = arith.constant 0 : index
    %c0_7 = arith.constant 0 : index
    %15 = vector.load %arg3[%c0_6, %c0_7] : memref<4x1xf32, #tpu.memory_space<vmem>>, vector<4x1xf32>
    %16 = vector.shape_cast %15 : vector<4x1xf32> to vector<1x4x1xf32>
    %c0_8 = arith.constant 0 : index
    %c0_9 = arith.constant 0 : index
    %17 = vector.load %arg4[%c0_8, %c0_9] : memref<4x1xf32, #tpu.memory_space<vmem>>, vector<4x1xf32>
    %18 = vector.shape_cast %17 : vector<4x1xf32> to vector<1x4x1xf32>
    %19 = vector.broadcast %14 : vector<2x1x256xf32> to vector<2x4x256xf32>
    %20 = arith.mulf %6, %19 : vector<2x4x256xf32>
    %21 = vector.broadcast %16 : vector<1x4x1xf32> to vector<2x4x256xf32>
    %22 = arith.mulf %21, %20 : vector<2x4x256xf32>
    %23 = vector.broadcast %18 : vector<1x4x1xf32> to vector<2x4x256xf32>
    %24 = arith.addf %22, %23 : vector<2x4x256xf32>
    %c0_10 = arith.constant 0 : index
    %c0_11 = arith.constant 0 : index
    %c0_12 = arith.constant 0 : index
    %25 = vector.load %arg5[%c0_10, %c0_11, %c0_12] : memref<2x4x256xf32, #tpu.memory_space<vmem>>, vector<2x4x256xf32>
    tpu.vector_store %arg5[%c0_10, %c0_11, %c0_12], %24 {strides = array<i32>} : memref<2x4x256xf32, #tpu.memory_space<vmem>>, vector<2x4x256xf32>,
    return
  }
  func.func @transform_0(%arg0: i32, %arg1: i32) -> (i32, i32, i32) {
    %c0_i32 = arith.constant 0 : i32
    %c0_i32_0 = arith.constant 0 : i32
    return %arg0, %c0_i32, %arg1 : i32, i32, i32
  }
  func.func @transform_1(%arg0: i32, %arg1: i32) -> (i32, i32) {
    %c0_i32 = arith.constant 0 : i32
    %c0_i32_0 = arith.constant 0 : i32
    %c0_i32_1 = arith.constant 0 : i32
    return %c0_i32, %c0_i32_0 : i32, i32
  }
  func.func @transform_2(%arg0: i32, %arg1: i32) -> (i32, i32) {
    %c0_i32 = arith.constant 0 : i32
    %c0_i32_0 = arith.constant 0 : i32
    %c0_i32_1 = arith.constant 0 : i32
    return %c0_i32, %c0_i32_0 : i32, i32
  }
  func.func @transform_3(%arg0: i32, %arg1: i32) -> (i32, i32, i32) {
    %c0_i32 = arith.constant 0 : i32
    %c0_i32_0 = arith.constant 0 : i32
    return %arg0, %c0_i32, %arg1 : i32, i32, i32
  }
}

</mosaic_0001>

<llo_original>
// kernel: tpu_custom_call.1
$region0: #{tpu_custom_call.1}
  #allocation0 [shape = 'u32[]', space=smem, size = 0x4, offset = 0x4, fixed_abs, tag = 'smem constant byte address 0x4 - core index']
  #allocation1 [shape = 'u32[144,128]{1,0:T(1,128)}', space=vmem, size = 0x12000, scoped, tag = 'internal scratch']
  %s0 = inlined_call_operand.hbm [shape: f32[2,4,256], index: 0, kind: input, shape index: {}]
  %s1 = inlined_call_operand.vmem [shape: f32[4,1], index: 1, kind: input, shape index: {}]
  %s2 = inlined_call_operand.vmem [shape: f32[4,1], index: 2, kind: input, shape index: {}]
  %s3 = inlined_call_operand.hbm [shape: f32[2,4,256], index: 3, kind: output, shape index: {}]
  %s4 = sld [smem:[#allocation0]]
  $region26: #{tpu_custom_call.1} parent=0
    _
  %s6 = ssub.s32 1, %s4
  %s7 = scalar_select 0, %s6, %s4
  $region1: #{tpu_custom_call.1} parent=0
    #allocation2 [shape = 'u8[8192]{0}', space=vmem, size = 0x2000, scoped, tag = 'input window, operand 0, single buffered']
    #allocation3 [shape = 's32[1]{0}', space=sflag, size = 0x4, scoped, tag = 'scoped memory for tpu_custom_call.1']
    #allocation4 [shape = 's32[1]{0}', space=sflag, size = 0x4, scoped, tag = 'scoped memory for tpu_custom_call.1']
    #allocation5 [shape = 'u8[8192]{0}', space=vmem, size = 0x2000, scoped, tag = 'output window, operand 0, single buffered']
    %8 = vsyncpa [#allocation3], 0
    %9 = vsyncpa [#allocation4], 0
    // Predicated region
    $region2: #{tpu_custom_call.1} parent=1 // pred_check
      _
    $region3: #{tpu_custom_call.1} parent=1 // pred_check_branch
      %11 = sbr.rel (0) target = $region5
    $region4: #{tpu_custom_call.1} parent=1 // pred_region
      %s13 = ssub.s32 256, 256
      %14 = vsyncadd [#allocation3], %s13
      %s15 = sshll.u32 [#allocation2], 4
      %s16 = int_to_ptr.vmem [resolvable:$true] %s15
      %21 = dma.hbm_to_vmem [thread:$0]  %s0, 256, %s16, [#allocation3], 128, 128, 8
    $region5: #{tpu_custom_call.1} parent=1 // pred_fallthru
      _
    // Predicated region
    $region6: #{tpu_custom_call.1} parent=1 // pred_check
      _
    $region7: #{tpu_custom_call.1} parent=1 // pred_check_branch
      %23 = sbr.rel (0) target = $region9
    $region8: #{tpu_custom_call.1} parent=1 // pred_region
      _
    $region9: #{tpu_custom_call.1} parent=1 // pred_fallthru
      _
    // Predicated region
    $region10: #{tpu_custom_call.1} parent=1 // pred_check
      _
    $region11: #{tpu_custom_call.1} parent=1 // pred_check_branch
      %25 = sbr.rel (0) target = $region13
    $region12: #{tpu_custom_call.1} parent=1 // pred_region
      _
    $region13: #{tpu_custom_call.1} parent=1 // pred_fallthru
      _
    // Predicated region
    $region14: #{tpu_custom_call.1} parent=1 // pred_check
      _
    $region15: #{tpu_custom_call.1} parent=1 // pred_check_branch
      %27 = sbr.rel (0) target = $region17
    $region16: #{tpu_custom_call.1} parent=1 // pred_region
      %28 = dma.done [#allocation3], 256
    $region17: #{tpu_custom_call.1} parent=1 // pred_fallthru
      _
    %v29 = vld [vmem:[#allocation2] sm:$0xff]
    %v30 = vld [vmem:[#allocation2 + $0x8] sm:$0xff]
    %v33 = vcombine.high %v29, %v29
    %v34 = vcombine.high %v30, %v30
    %vm37 = vcmask 1043456
    %v38 = vsel %vm37, %v29, 0.0
    %v39 = vrot.slane %v38, 4
    %v40 = vadd.f32 %v38, %v39
    %v41 = vrot.slane %v40, 2
    %v42 = vadd.f32 %v40, %v41
    %v43 = vrot.slane %v42, 1
    %v44 = vadd.f32 %v42, %v43
    %v45 = vsel %vm37, %v33, 0.0
    %v46 = vrot.slane %v45, 4
    %v47 = vadd.f32 %v45, %v46
    %v48 = vrot.slane %v47, 2
    %v49 = vadd.f32 %v47, %v48
    %v50 = vrot.slane %v49, 1
    %v51 = vadd.f32 %v49, %v50
    %v52 = vsel %vm37, %v30, 0.0
    %v53 = vrot.slane %v52, 4
    %v54 = vadd.f32 %v52, %v53
    %v55 = vrot.slane %v54, 2
    %v56 = vadd.f32 %v54, %v55
    %v57 = vrot.slane %v56, 1
    %v58 = vadd.f32 %v56, %v57
    %v59 = vsel %vm37, %v34, 0.0
    %v60 = vrot.slane %v59, 4
    %v61 = vadd.f32 %v59, %v60
    %v62 = vrot.slane %v61, 2
    %v63 = vadd.f32 %v61, %v62
    %v64 = vrot.slane %v63, 1
    %v65 = vadd.f32 %v63, %v64
    %v66 = vmul.f32 %v44, 0.25
    %v67 = vmul.f32 %v51, 0.25
    %v68 = vmul.f32 %v58, 0.25
    %v69 = vmul.f32 %v65, 0.25
    %v74 = vcombine.low %v66, %v67
    %v75 = vcombine.low %v68, %v69
    %v78 = vsub.f32 %v29, %v74
    %v79 = vsub.f32 %v30, %v75
    %v80 = vmul.f32 %v78, %v78
    %v81 = vmul.f32 %v79, %v79
    %v84 = vcombine.high %v80, %v80
    %v85 = vcombine.high %v81, %v81
    %v88 = vsel %vm37, %v80, 0.0
    %v89 = vrot.slane %v88, 4
    %v90 = vadd.f32 %v88, %v89
    %v91 = vrot.slane %v90, 2
    %v92 = vadd.f32 %v90, %v91
    %v93 = vrot.slane %v92, 1
    %v94 = vadd.f32 %v92, %v93
    %v95 = vsel %vm37, %v84, 0.0
    %v96 = vrot.slane %v95, 4
    %v97 = vadd.f32 %v95, %v96
    %v98 = vrot.slane %v97, 2
    %v99 = vadd.f32 %v97, %v98
    %v100 = vrot.slane %v99, 1
    %v101 = vadd.f32 %v99, %v100
    %v102 = vsel %vm37, %v81, 0.0
    %v103 = vrot.slane %v102, 4
    %v104 = vadd.f32 %v102, %v103
    %v105 = vrot.slane %v104, 2
    %v106 = vadd.f32 %v104, %v105
    %v107 = vrot.slane %v106, 1
    %v108 = vadd.f32 %v106, %v107
    %v109 = vsel %vm37, %v85, 0.0
    %v110 = vrot.slane %v109, 4
    %v111 = vadd.f32 %v109, %v110
    %v112 = vrot.slane %v111, 2
    %v113 = vadd.f32 %v111, %v112
    %v114 = vrot.slane %v113, 1
    %v115 = vadd.f32 %v113, %v114
    %v116 = vmul.f32 %v94, 0.33333334
    %v117 = vmul.f32 %v101, 0.33333334
    %v118 = vmul.f32 %v108, 0.33333334
    %v119 = vmul.f32 %v115, 0.33333334
    %v120 = vadd.f32 %v116, 0.001
    %v121 = vadd.f32 %v117, 0.001
    %v122 = vadd.f32 %v118, 0.001
    %v123 = vadd.f32 %v119, 0.001
    %v124 = vrsqrt.pop %v120
    %v125 = vrsqrt.pop %v121
    %v126 = vrsqrt.pop %v122
    %v127 = vrsqrt.pop %v123
    %v128 = vld [vmem:[%s1] sm:$0xf]
    %v129 = vld [vmem:[%s2] sm:$0xf]
    %v134 = vcombine.low %v124, %v125
    %v135 = vcombine.low %v126, %v127
    %v138 = vmul.f32 %v78, %v134
    %v139 = vmul.f32 %v79, %v135
    %141 = vset.pattern.permute.xlu0 0
    %142 = vperm.xlu0 %141, %v128
    %v143 = vpop.permute.xlu0 %142
    %v147 = vcombine.high %v138, %v138
    %v148 = vcombine.high %v139, %v139
    %v151 = vmul.f32 %v143, %v138
    %v152 = vmul.f32 %v143, %v147
    %v153 = vmul.f32 %v143, %v139
    %v154 = vmul.f32 %v143, %v148
    %156 = vset.pattern.permute.xlu0 0
    %157 = vperm.xlu0 %156, %v129
    %v158 = vpop.permute.xlu0 %157
    %v160 = vadd.f32 %v151, %v158
    %v161 = vadd.f32 %v152, %v158
    %v162 = vadd.f32 %v153, %v158
    %v163 = vadd.f32 %v154, %v158
    %v168 = vcombine.low %v160, %v161
    %v169 = vcombine.low %v162, %v163
    %172 = vst [vmem:[#allocation5] sm:$0xff] %v168
    %173 = vst [vmem:[#allocation5 + $0x8] sm:$0xff] %v169
    // Predicated region
    $region18: #{tpu_custom_call.1} parent=1 // pred_check
      _
    $region19: #{tpu_custom_call.1} parent=1 // pred_check_branch
      %175 = sbr.rel (0) target = $region21
    $region20: #{tpu_custom_call.1} parent=1 // pred_region
      %s177 = ssub.s32 256, 256
      %178 = vsyncadd [#allocation4], %s177
      %s179 = sshll.u32 [#allocation5], 4
      %s180 = int_to_ptr.vmem [resolvable:$true] %s179
      %185 = dma.vmem_to_hbm [thread:$0]  %s180, 256, %s3, [#allocation4], 128, 128, 8
    $region21: #{tpu_custom_call.1} parent=1 // pred_fallthru
      _
    // Predicated region
    $region22: #{tpu_custom_call.1} parent=1 // pred_check
      _
    $region23: #{tpu_custom_call.1} parent=1 // pred_check_branch
      %187 = sbr.rel (0) target = $region25
    $region24: #{tpu_custom_call.1} parent=1 // pred_region
      %188 = dma.done [#allocation4], 256
    $region25: #{tpu_custom_call.1} parent=1 // pred_fallthru
      _
    %189 = vsyncpa [#allocation3], 1
    %190 = vsyncpa [#allocation4], 1

</llo_original>
